<compile_context>
chip_gen: v6e
topology: v6e:2x2x1
jax: 0.10.0
libtpu: 0.0.40
codegen_flags: <defaults>
</compile_context>

<pallas_src>
import functools
import math

import jax
import jax.numpy as jnp
from jax.experimental import pallas as pl
from jax.experimental.pallas import tpu as pltpu


def _round_up(x, m):
    return ((x + m - 1) // m) * m


def _physical_vmem_bytes():
    try:
        info = pltpu.get_tpu_info()
        return int(getattr(info, "vmem_capacity_bytes", 64 << 20))
    except Exception:
        return 64 << 20  # conservative (v7x-sized) fallback


def _choose_tiles(N, fout_pad, adj_itemsize, budget):
    """Pick (tm, tk, vmem_need_bytes) for the adj @ support streaming pass."""
    if N <= 256:
        tm = _round_up(N, 8)
    elif N < 4096:
        tm = 256          # keeps nr >= 2 so v7x's two TCs both get row strips
    else:
        tm = 512

    tk_cap = min(_round_up(N, 128), 8192)

    def vmem_need(tk):
        return (2 * tm * tk * adj_itemsize        # adj tile, double-buffered
                + 2 * tk * fout_pad * 2           # support tile (bf16), double-buffered
                + 2 * tm * fout_pad * 4           # output tile (f32), double-buffered
                + tm * fout_pad * 4               # f32 accumulator scratch
                + tm * tk * (adj_itemsize + 2)    # in-kernel cast/mask temporaries
                + tm * fout_pad * 4)              # dot-result temporary

    if vmem_need(tk_cap) <= budget:
        tk = tk_cap                               # whole k range in one block if it fits
    else:
        tk = 128
        while tk * 2 <= tk_cap and vmem_need(tk * 2) <= budget:
            tk *= 2
    return tm, tk, vmem_need(tk)


def _adj_times_support_kernel(s_ref, a_ref, o_ref, acc_ref, *,
                              n_valid, tk, negative_slope, active, ragged_k):
    """One (i, k) step: acc[i] += adj[i-strip, k-tile] @ support[k-tile]."""
    k = pl.program_id(1)

    @pl.when(k == 0)
    def _init():
        acc_ref[...] = jnp.zeros_like(acc_ref)

    a = a_ref[...].astype(jnp.bfloat16)           # no-op if adj already bf16
    if ragged_k:
        # Zero the out-of-bounds columns of the (only) ragged k tile so stale
        # VMEM garbage (possibly NaN) never reaches the accumulator.
        cols = jax.lax.broadcasted_iota(jnp.int32, a.shape, 1) + k * tk
        a = jnp.where(cols < n_valid, a, jnp.zeros_like(a))

    acc_ref[...] += jnp.dot(a, s_ref[...], preferred_element_type=jnp.float32)

    @pl.when(k == pl.num_programs(1) - 1)
    def _finalize():
        out = acc_ref[...]
        if active:
            out = jnp.where(out > 0, out, negative_slope * out)
        o_ref[...] = out.astype(o_ref.dtype)


def prepare_adj(adj):
    """Optional once-per-graph prep: bf16 adjacency halves the dominant HBM stream
    when the same adj is reused across layers (entries {0,1,2,...} are exact)."""
    return adj.astype(jnp.bfloat16)


def gnn_layer_forward(features, adj, weight, *, active=True, negative_slope=0.2):
    """Pallas TPU implementation of GNNLayer.forward (dropout == 0 / eval mode)."""
    N, Fin = features.shape
    Fout = weight.shape[1]
    assert adj.shape == (N, N)
    assert weight.shape[0] == Fin

    fout_pad = _round_up(max(Fout, 128), 128)     # lane-dense output / accumulator

    # Small prologue (O(N*Fin + Fin*Fout)): pad W to 128 lanes, precompute support.
    w = weight.astype(jnp.bfloat16)
    if fout_pad != Fout:
        w = jnp.pad(w, ((0, 0), (0, fout_pad - Fout)))
    support = jnp.dot(features.astype(jnp.bfloat16), w,
                      preferred_element_type=jnp.float32).astype(jnp.bfloat16)

    budget = _physical_vmem_bytes() * 3 // 4      # headroom for compiler scratch
    adj_itemsize = jnp.dtype(adj.dtype).itemsize
    tm, tk, vmem_need = _choose_tiles(N, fout_pad, adj_itemsize, budget)
    nr, nk = pl.cdiv(N, tm), pl.cdiv(N, tk)

    # Pad only the SMALL support array to the k-tile grid (zero rows are exact);
    # the N^2 adjacency is streamed unpadded / uncast straight from HBM.
    nk_pad = nk * tk
    if nk_pad != N:
        support = jnp.pad(support, ((0, nk_pad - N), (0, 0)))
    ragged_k = nk_pad != N

    kernel = functools.partial(
        _adj_times_support_kernel,
        n_valid=N, tk=tk, negative_slope=negative_slope,
        active=active, ragged_k=ragged_k)

    vmem_limit = int(min(max(vmem_need + (4 << 20), 32 << 20), budget))

    support_bytes = (nr if nk > 1 else 1) * nk_pad * fout_pad * 2
    cost = pl.CostEstimate(
        flops=2 * (nr * tm) * nk_pad * fout_pad,
        transcendentals=0,
        bytes_accessed=int(N * N * adj_itemsize      # adjacency stream (dominant)
                           + support_bytes
                           + nr * tm * fout_pad * 4),
    )

    out = pl.pallas_call(
        kernel,
        out_shape=jax.ShapeDtypeStruct((nr * tm, fout_pad), jnp.float32),
        grid_spec=pltpu.PrefetchScalarGridSpec(
            num_scalar_prefetch=0,
            grid=(nr, nk),
            in_specs=[
                pl.BlockSpec((tk, fout_pad), lambda i, k: (k, 0)),   # support
                pl.BlockSpec((tm, tk), lambda i, k: (i, k)),         # adj (raw dtype)
            ],
            out_specs=pl.BlockSpec((tm, fout_pad), lambda i, k: (i, 0)),
            scratch_shapes=[pltpu.VMEM((tm, fout_pad), jnp.float32)],
        ),
        compiler_params=pltpu.CompilerParams(
            dimension_semantics=("parallel", "arbitrary"),
            vmem_limit_bytes=vmem_limit,
        ),
        cost_estimate=cost,
    )(support, adj)

    return out[:N, :Fout]


def xavier_uniform(key, fan_in, fan_out, dtype=jnp.float32):
    bound = math.sqrt(6.0 / (fan_in + fan_out))
    return jax.random.uniform(
        key, (fan_in, fan_out), dtype=dtype, minval=-bound, maxval=bound
    )


def _leaky_ref(x, slope=0.2):
    return jnp.where(x > 0, x, slope * x)


if __name__ == "__main__":
    # Small shapes: N=512 nodes, in_features=64, out_features=32.
    N, FIN, FOUT = 512, 64, 32
    key = jax.random.PRNGKey(0)
    k_w, k_x, k_a = jax.random.split(key, 3)

    weight = xavier_uniform(k_w, FIN, FOUT)
    features = jax.random.normal(k_x, (N, FIN), dtype=jnp.float32)
    a = (jax.random.uniform(k_a, (N, N)) < 0.1).astype(jnp.float32)
    adj = a + a.T + jnp.eye(N, dtype=jnp.float32)

    # Path 1: raw f32 adjacency streamed straight from HBM (no N^2 prologue).
    out = jax.block_until_ready(gnn_layer_forward(features, adj, weight, active=True))
    assert out.shape == (N, FOUT)

    # Path 2: bf16 adjacency prepared once per graph (amortized across layers).
    out_b16 = jax.block_until_ready(
        gnn_layer_forward(features, prepare_adj(adj), weight, active=True))

    # Path 3: ragged N (exercises the in-kernel column mask / ragged row strip).
    Nr = 500
    out_ragged = jax.block_until_ready(
        gnn_layer_forward(features[:Nr], adj[:Nr, :Nr], weight, active=True))
    assert out_ragged.shape == (Nr, FOUT)

    # Tight check vs a reference using the same bf16 casts as the kernel.
    sup_ref = jnp.dot(features.astype(jnp.bfloat16), weight.astype(jnp.bfloat16),
                      preferred_element_type=jnp.float32).astype(jnp.bfloat16)
    ref_b = _leaky_ref(jnp.dot(adj.astype(jnp.bfloat16), sup_ref,
                               preferred_element_type=jnp.float32))
    assert jnp.allclose(out, ref_b, atol=5e-2, rtol=1e-2), \
        float(jnp.max(jnp.abs(out - ref_b)))
    assert jnp.allclose(out_b16, out, atol=1e-3, rtol=1e-3), \
        float(jnp.max(jnp.abs(out_b16 - out)))

    ref_rag = _leaky_ref(jnp.dot(adj[:Nr, :Nr].astype(jnp.bfloat16), sup_ref[:Nr],
                                 preferred_element_type=jnp.float32))
    assert jnp.allclose(out_ragged, ref_rag, atol=5e-2, rtol=1e-2), \
        float(jnp.max(jnp.abs(out_ragged - ref_rag)))

    # Loose sanity check against full-f32 math (bf16 operands lose ~3 digits).
    ref_f32 = _leaky_ref(adj @ (features @ weight))
    assert jnp.allclose(out, ref_f32, atol=0.5, rtol=0.05), \
        float(jnp.max(jnp.abs(out - ref_f32)))

    print("KERNEL_OK")
</pallas_src>

<mosaic_0001>
module attributes {stable_mosaic.version = 11 : i64} {
  func.func @_adj_times_support_kernel(%arg0: i32, %arg1: i32, %arg2: memref<512x128xbf16, #tpu.memory_space<vmem>>, %arg3: memref<256x512xf32, #tpu.memory_space<vmem>>, %arg4: memref<256x128xf32, #tpu.memory_space<vmem>>, %arg5: memref<256x128xf32, #tpu.memory_space<vmem>>) attributes {dimension_semantics = [#tpu.dimension_semantics<parallel>, #tpu.dimension_semantics<arbitrary>], iteration_bounds = array<i64: 2, 1>, scalar_prefetch = 0 : i64, scratch_operands = 1 : i64, tpu.core_type = #tpu.core_type<tc>, window_params = [{transform_indices = @transform_0, window_bounds = array<i64: 512, 128>}, {transform_indices = @transform_1, window_bounds = array<i64: 256, 512>}, {transform_indices = @transform_2, window_bounds = array<i64: 256, 128>}]} {
    %c0_i32 = arith.constant 0 : i32
    %0 = arith.cmpi eq, %arg1, %c0_i32 : i32
    %1 = arith.extui %0 : i1 to i32
    %c0_i32_0 = arith.constant 0 : i32
    %2 = arith.cmpi ne, %1, %c0_i32_0 : i32
    scf.if %2 {
      %cst_10 = arith.constant 0.000000e+00 : f32
      %13 = vector.broadcast %cst_10 : f32 to vector<256x128xf32>
      %c0_11 = arith.constant 0 : index
      %c0_12 = arith.constant 0 : index
      %14 = vector.load %arg5[%c0_11, %c0_12] : memref<256x128xf32, #tpu.memory_space<vmem>>, vector<256x128xf32>
      tpu.vector_store %arg5[%c0_11, %c0_12], %13 {strides = array<i32>} : memref<256x128xf32, #tpu.memory_space<vmem>>, vector<256x128xf32>,
    } else {
    }
    %c0 = arith.constant 0 : index
    %c0_1 = arith.constant 0 : index
    %3 = vector.load %arg3[%c0, %c0_1] : memref<256x512xf32, #tpu.memory_space<vmem>>, vector<256x512xf32>
    %4 = arith.truncf %3 : vector<256x512xf32> to vector<256x512xbf16>
    %c0_2 = arith.constant 0 : index
    %c0_3 = arith.constant 0 : index
    %5 = vector.load %arg5[%c0_2, %c0_3] : memref<256x128xf32, #tpu.memory_space<vmem>>, vector<256x128xf32>
    %c0_4 = arith.constant 0 : index
    %c0_5 = arith.constant 0 : index
    %6 = vector.load %arg2[%c0_4, %c0_5] : memref<512x128xbf16, #tpu.memory_space<vmem>>, vector<512x128xbf16>
    %cst = arith.constant dense<0.000000e+00> : vector<256x128xf32>
    %7 = tpu.matmul %4, %6, %cst {dimension_numbers = #tpu.dot_dimension_numbers<[1], [0], [0], [1], [0, 0, 1, 1], [], []>} : vector<256x512xbf16>, vector<512x128xbf16>, vector<256x128xf32> -> vector<256x128xf32>
    %8 = arith.addf %5, %7 : vector<256x128xf32>
    %c0_6 = arith.constant 0 : index
    %c0_7 = arith.constant 0 : index
    %9 = vector.load %arg5[%c0_6, %c0_7] : memref<256x128xf32, #tpu.memory_space<vmem>>, vector<256x128xf32>
    tpu.vector_store %arg5[%c0_6, %c0_7], %8 {strides = array<i32>} : memref<256x128xf32, #tpu.memory_space<vmem>>, vector<256x128xf32>,
    %c0_i32_8 = arith.constant 0 : i32
    %10 = arith.cmpi eq, %arg1, %c0_i32_8 : i32
    %11 = arith.extui %10 : i1 to i32
    %c0_i32_9 = arith.constant 0 : i32
    %12 = arith.cmpi ne, %11, %c0_i32_9 : i32
    scf.if %12 {
      %c0_10 = arith.constant 0 : index
      %c0_11 = arith.constant 0 : index
      %13 = vector.load %arg5[%c0_10, %c0_11] : memref<256x128xf32, #tpu.memory_space<vmem>>, vector<256x128xf32>
      %cst_12 = arith.constant 0.000000e+00 : f32
      %14 = vector.broadcast %cst_12 : f32 to vector<256x128xf32>
      %15 = arith.cmpf ogt, %13, %14 : vector<256x128xf32>
      %cst_13 = arith.constant 2.000000e-01 : f32
      %16 = vector.broadcast %cst_13 : f32 to vector<256x128xf32>
      %17 = arith.mulf %16, %13 : vector<256x128xf32>
      %18 = arith.select %15, %13, %17 : vector<256x128xi1>, vector<256x128xf32>
      %c0_14 = arith.constant 0 : index
      %c0_15 = arith.constant 0 : index
      %19 = vector.load %arg4[%c0_14, %c0_15] : memref<256x128xf32, #tpu.memory_space<vmem>>, vector<256x128xf32>
      tpu.vector_store %arg4[%c0_14, %c0_15], %18 {strides = array<i32>} : memref<256x128xf32, #tpu.memory_space<vmem>>, vector<256x128xf32>,
    } else {
    }
    return
  }
  func.func @transform_0(%arg0: i32, %arg1: i32) -> (i32, i32) {
    %c0_i32 = arith.constant 0 : i32
    %c0_i32_0 = arith.constant 0 : i32
    return %arg1, %c0_i32 : i32, i32
  }
  func.func @transform_1(%arg0: i32, %arg1: i32) -> (i32, i32) {
    %c0_i32 = arith.constant 0 : i32
    return %arg0, %arg1 : i32, i32
  }
  func.func @transform_2(%arg0: i32, %arg1: i32) -> (i32, i32) {
    %c0_i32 = arith.constant 0 : i32
    %c0_i32_0 = arith.constant 0 : i32
    return %arg0, %c0_i32 : i32, i32
  }
}

</mosaic_0001>

<llo_original>
// kernel: tpu_custom_call.1
$region0: #{tpu_custom_call.1}
  #allocation0 [shape = 'u32[]', space=smem, size = 0x4, offset = 0x4, fixed_abs, tag = 'smem constant byte address 0x4 - core index']
  #allocation1 [shape = 'u32[144,128]{1,0:T(1,128)}', space=vmem, size = 0x12000, scoped, tag = 'internal scratch']
  #allocation2 [shape = 'f32[256,128]{1,0:T(8,128)}', space=vmem, size = 0x20000, scoped, tag = 'scratch operand']
  %s0 = inlined_call_operand.hbm [shape: bf16[512,128], index: 0, kind: input, shape index: {}]
  %s1 = inlined_call_operand.hbm [shape: f32[512,512], index: 1, kind: input, shape index: {}]
  %s2 = inlined_call_operand.hbm [shape: f32[512,128], index: 2, kind: output, shape index: {}]
  %s3 = sld [smem:[#allocation0]]
  $region57: #{tpu_custom_call.1} parent=0
    _
  %s5 = ssub.s32 1, %s3
  %s6 = scalar_select 0, %s5, %s3
  $region1: #{tpu_custom_call.1} parent=0
    #allocation3 [shape = 'u8[131072]{0}', space=vmem, size = 0x20000, scoped, tag = 'input window, operand 0, single buffered']
    #allocation4 [shape = 's32[2]{0}', space=sflag, size = 0x8, scoped, tag = 'scoped memory for tpu_custom_call.1']
    #allocation5 [shape = 's32[2]{0}', space=sflag, size = 0x8, scoped, tag = 'scoped memory for tpu_custom_call.1']
    #allocation6 [shape = 'u8[1048576]{0}', space=vmem, size = 0x100000, scoped, tag = 'input window, operand 1']
    #allocation7 [shape = 's32[2]{0}', space=sflag, size = 0x8, scoped, tag = 'scoped memory for tpu_custom_call.1']
    #allocation8 [shape = 'u8[262144]{0}', space=vmem, size = 0x40000, scoped, tag = 'output window, operand 0']
    %7 = vsyncpa [#allocation4], 0
    %8 = vsyncpa [#allocation7], 0
    %s9 = scalar_lea.sflag [#allocation7], 1
    %10 = vsyncpa %s9, 0
    %11 = vsyncpa [#allocation5], 0
    %s12 = scalar_lea.sflag [#allocation5], 1
    %13 = vsyncpa %s12, 0
    loop: start=0, step=1, limit=4
    $region2: #{tpu_custom_call.1} parent=1 // loop_pre_header
      _
    $region3: #{tpu_custom_call.1} parent=1 // loop_header
      %s15 = sphi 0, %s19
      %p16 = scmp.ge.s32.totalorder %s15, 4
      %s22 = sphi 0, %s34
      %s23 = sphi 0, %s30
      %s24 = sphi 0, %s22
      %s25 = sphi 0, %s23
      %s26 = sphi 0, %s24
      %s27 = sphi 0, %s25
      %s37 = sphi 0, %s39
      %s40 = sphi 0, %s37
      %s41 = sphi 0, %s40
      %s57 = sphi 0, %s41
      %s65 = sphi 0, %s67
      %s68 = sphi 0, %s65
      %s69 = sphi 0, %s68
      %s85 = sphi 0, %s69
      %s91 = sphi 0, %s93
      %s94 = sphi 0, %s91
      %s95 = sphi 0, %s94
      %s111 = sphi 0, %s95
    $region4: #{tpu_custom_call.1} parent=1 // loop_header_branch
      %18 = sbr.rel (%p16) target = $region8
    $region5: #{tpu_custom_call.1} parent=1 // loop_body
      %s20 = ssub.s32 %s15, 1
      %s21 = ssub.s32 %s15, 2
      %s28 = sadd.s32 1, %s23
      %p29 = scmp.ge.s32.totalorder %s28, 1
      %s30 = scalar_select %p29, 0, %s28
      %s31 = sadd.s32 1, %s22
      %s32 = scalar_select %p29, %s31, %s22
      %p33 = scmp.ge.s32.totalorder %s32, 2
      %s34 = scalar_select %p33, 0, %s32
      %s35 = ssub.s32 %s23, %s30
      %p36 = scmp.eq.s32.totalorder %s35, 0
      %s38 = sadd.s32 %s37, 1
      %s39 = scalar_select %p36, %s37, %s38
      %p42 = pneg %p36
      %p43 = scmp.eq.s32.totalorder %s15, 1
      %p44 = por %p42, %p43
      %p45 = scmp.ne.s32.totalorder %s37, %s40
      %p46 = scmp.eq.s32.totalorder %s15, 0
      %p47 = por %p45, %p46
      %p48 = scmp.ne.s32.totalorder %s37, %s40
      %p49 = scmp.eq.s32.totalorder %s20, 1
      %p50 = por %p48, %p49
      %p51 = scmp.ne.s32.totalorder %s40, %s41
      %p52 = scmp.eq.s32.totalorder %s20, 0
      %p53 = por %p51, %p52
      %p54 = scmp.ne.s32.totalorder %s40, %s41
      %p55 = scmp.eq.s32.totalorder %s21, 1
      %p56 = por %p54, %p55
      %p58 = scmp.ne.s32.totalorder %s41, %s57
      %p59 = scmp.eq.s32.totalorder %s21, 0
      %p60 = por %p58, %p59
      %s61 = ssub.s32 %s22, %s34
      %s62 = ssub.s32 %s23, %s30
      %s63 = sor.u32 %s61, %s62
      %p64 = scmp.eq.s32.totalorder %s63, 0
      %s66 = sadd.s32 %s65, 1
      %s67 = scalar_select %p64, %s65, %s66
      %p70 = pneg %p64
      %p71 = scmp.eq.s32.totalorder %s15, 1
      %p72 = por %p70, %p71
      %p73 = scmp.ne.s32.totalorder %s65, %s68
      %p74 = scmp.eq.s32.totalorder %s15, 0
      %p75 = por %p73, %p74
      %p76 = scmp.ne.s32.totalorder %s65, %s68
      %p77 = scmp.eq.s32.totalorder %s20, 1
      %p78 = por %p76, %p77
      %p79 = scmp.ne.s32.totalorder %s68, %s69
      %p80 = scmp.eq.s32.totalorder %s20, 0
      %p81 = por %p79, %p80
      %p82 = scmp.ne.s32.totalorder %s68, %s69
      %p83 = scmp.eq.s32.totalorder %s21, 1
      %p84 = por %p82, %p83
      %p86 = scmp.ne.s32.totalorder %s69, %s85
      %p87 = scmp.eq.s32.totalorder %s21, 0
      %p88 = por %p86, %p87
      %s89 = ssub.s32 %s22, %s34
      %p90 = scmp.eq.s32.totalorder %s89, 0
      %s92 = sadd.s32 %s91, 1
      %s93 = scalar_select %p90, %s91, %s92
      %p96 = pneg %p90
      %p97 = scmp.eq.s32.totalorder %s15, 1
      %p98 = por %p96, %p97
      %p99 = scmp.ne.s32.totalorder %s91, %s94
      %p100 = scmp.eq.s32.totalorder %s15, 0
      %p101 = por %p99, %p100
      %p102 = scmp.ne.s32.totalorder %s91, %s94
      %p103 = scmp.eq.s32.totalorder %s20, 1
      %p104 = por %p102, %p103
      %p105 = scmp.ne.s32.totalorder %s94, %s95
      %p106 = scmp.eq.s32.totalorder %s20, 0
      %p107 = por %p105, %p106
      %p108 = scmp.ne.s32.totalorder %s94, %s95
      %p109 = scmp.eq.s32.totalorder %s21, 1
      %p110 = por %p108, %p109
      %p112 = scmp.ne.s32.totalorder %s95, %s111
      %p113 = scmp.eq.s32.totalorder %s21, 0
      %p114 = por %p112, %p113
      %p115 = scmp.le.s32.totalorder 1, %s15
      %p116 = scmp.lt.s32.totalorder %s15, 3
      %p117 = pnand %p115, %p116
      %p118 = pneg %p117
      // Predicated region
      $region9: #{tpu_custom_call.1} parent=5 // pred_check
        _
      $region10: #{tpu_custom_call.1} parent=5 // pred_check_branch
        %120 = sbr.rel (%p117) target = $region12
      $region11: #{tpu_custom_call.1} parent=5 // pred_region
        %s121 = ssub.s32 %s15, 1
        // Predicated region
        $region13: #{tpu_custom_call.1} parent=11 // pred_check
          %p122 = pneg %p53
        $region14: #{tpu_custom_call.1} parent=11 // pred_check_branch
          %124 = sbr.rel (%p122) target = $region16
        $region15: #{tpu_custom_call.1} parent=11 // pred_region
          %s125 = smul.u32 64, %s25
          %s127 = ssub.s32 4096, 4096
          %128 = vsyncadd [#allocation4], %s127
          %s129 = smul.addr %s125, 64
          %s130 = scalar_lea.hbm %s0, %s129
          %s131 = sshll.u32 [#allocation3], 4
          %s132 = int_to_ptr.vmem [resolvable:$true] %s131
          %137 = dma.hbm_to_vmem [thread:$0]  %s130, 4096, %s132, [#allocation4], 64, 64, 4
        $region16: #{tpu_custom_call.1} parent=11 // pred_fallthru
          _
      $region12: #{tpu_custom_call.1} parent=5 // pred_fallthru
        _
      %p138 = scmp.lt.s32.totalorder %s15, 2
      // Predicated region
      $region17: #{tpu_custom_call.1} parent=5 // pred_check
        %p139 = pneg %p138
      $region18: #{tpu_custom_call.1} parent=5 // pred_check_branch
        %141 = sbr.rel (%p139) target = $region20
      $region19: #{tpu_custom_call.1} parent=5 // pred_region
        // Predicated region
        $region21: #{tpu_custom_call.1} parent=19 // pred_check
          %p142 = pneg %p75
        $region22: #{tpu_custom_call.1} parent=19 // pred_check_branch
          %144 = sbr.rel (%p142) target = $region24
        $region23: #{tpu_custom_call.1} parent=19 // pred_region
          %s145 = sand.u32 %s65, 1
          %s146 = scalar_lea.sflag [#allocation7], %s145
          %s147 = sand.u32 %s65, 1
          %s148 = smul.addr %s147, 1024
          %s149 = scalar_lea.vmem [#allocation6], %s148
          %s150 = smul.u32 32, %s22
          %s151 = smul.u32 4, %s23
          %s153 = ssub.s32 16384, 16384
          %154 = vsyncadd %s146, %s153
          %s155 = smul.addr %s150, 4
          %s156 = sadd.s32 %s151, %s155
          %s157 = smul.addr %s156, 128
          %s158 = scalar_lea.hbm %s1, %s157
          %s159 = sshll.u32 %s149, 4
          %s160 = int_to_ptr.vmem [resolvable:$true] %s159
          %165 = dma.hbm_to_vmem [thread:$0]  %s158, 16384, %s160, %s146, 512, 512, 32
        $region24: #{tpu_custom_call.1} parent=19 // pred_fallthru
          _
      $region20: #{tpu_custom_call.1} parent=5 // pred_fallthru
        _
      %p166 = scmp.le.s32.totalorder 1, %s15
      %p167 = scmp.lt.s32.totalorder %s15, 3
      %p168 = pnand %p166, %p167
      %p169 = pneg %p168
      // Predicated region
      $region25: #{tpu_custom_call.1} parent=5 // pred_check
        _
      $region26: #{tpu_custom_call.1} parent=5 // pred_check_branch
        %171 = sbr.rel (%p168) target = $region28
      $region27: #{tpu_custom_call.1} parent=5 // pred_region
        %s172 = ssub.s32 %s15, 1
        // Predicated region
        $region29: #{tpu_custom_call.1} parent=27 // pred_check
          %p173 = pneg %p53
        $region30: #{tpu_custom_call.1} parent=27 // pred_check_branch
          %175 = sbr.rel (%p173) target = $region32
        $region31: #{tpu_custom_call.1} parent=27 // pred_region
          %176 = dma.done [#allocation4], 4096
        $region32: #{tpu_custom_call.1} parent=27 // pred_fallthru
          _
        %s177 = sand.u32 %s68, 1
        %s178 = scalar_lea.sflag [#allocation7], %s177
        %s179 = sand.u32 %s68, 1
        %s180 = smul.addr %s179, 1024
        %s181 = scalar_lea.vmem [#allocation6], %s180
        // Predicated region
        $region33: #{tpu_custom_call.1} parent=27 // pred_check
          %p182 = pneg %p81
        $region34: #{tpu_custom_call.1} parent=27 // pred_check_branch
          %184 = sbr.rel (%p182) target = $region36
        $region35: #{tpu_custom_call.1} parent=27 // pred_region
          %185 = dma.done %s178, 16384
        $region36: #{tpu_custom_call.1} parent=27 // pred_fallthru
          _
        %p186 = pneg %p53
        %p187 = pneg %p50
        %s188 = sand.u32 %s68, 1
        %s189 = scalar_lea.sflag [#allocation7], %s188
        %s190 = sand.u32 %s68, 1
        %s191 = smul.addr %s190, 1024
        %s192 = scalar_lea.vmem [#allocation6], %s191
        %p193 = pneg %p81
        %p194 = pneg %p78
        %p195 = pneg %p107
        %p196 = pneg %p104
        %s197 = sand.u32 %s94, 1
        %s198 = scalar_lea.sflag [#allocation5], %s197
        %s199 = sand.u32 %s94, 1
        %s200 = smul.addr %s199, 256
        %s201 = scalar_lea.vmem [#allocation8], %s200
        %s202 = smul.u32 64, %s25
        %s203 = smul.u32 32, %s24
        %s204 = smul.u32 4, %s25
        %s205 = smul.u32 32, %s24
        %p207 = scmp.eq.s32.totalorder %s25, 0
        // Predicated region
        $region37: #{tpu_custom_call.1} parent=27 // pred_check
          %p208 = pneg %p207
        $region38: #{tpu_custom_call.1} parent=27 // pred_check_branch
          %210 = sbr.rel (%p208) target = $region40
        $region39: #{tpu_custom_call.1} parent=27 // pred_region
          %211 = vst [vmem:[#allocation2] sm:$0xff] 0.0
          %212 = vst [vmem:[#allocation2 + $0x8] sm:$0xff] 0.0
          %213 = vst [vmem:[#allocation2 + $0x10] sm:$0xff] 0.0
          %214 = vst [vmem:[#allocation2 + $0x18] sm:$0xff] 0.0
          %215 = vst [vmem:[#allocation2 + $0x20] sm:$0xff] 0.0
          %216 = vst [vmem:[#allocation2 + $0x28] sm:$0xff] 0.0
          %217 = vst [vmem:[#allocation2 + $0x30] sm:$0xff] 0.0
          %218 = vst [vmem:[#allocation2 + $0x38] sm:$0xff] 0.0
          %219 = vst [vmem:[#allocation2 + $0x40] sm:$0xff] 0.0
          %220 = vst [vmem:[#allocation2 + $0x48] sm:$0xff] 0.0
          %221 = vst [vmem:[#allocation2 + $0x50] sm:$0xff] 0.0
          %222 = vst [vmem:[#allocation2 + $0x58] sm:$0xff] 0.0
          %223 = vst [vmem:[#allocation2 + $0x60] sm:$0xff] 0.0
          %224 = vst [vmem:[#allocation2 + $0x68] sm:$0xff] 0.0
          %225 = vst [vmem:[#allocation2 + $0x70] sm:$0xff] 0.0
          %226 = vst [vmem:[#allocation2 + $0x78] sm:$0xff] 0.0
          %227 = vst [vmem:[#allocation2 + $0x80] sm:$0xff] 0.0
          %228 = vst [vmem:[#allocation2 + $0x88] sm:$0xff] 0.0
          %229 = vst [vmem:[#allocation2 + $0x90] sm:$0xff] 0.0
          %230 = vst [vmem:[#allocation2 + $0x98] sm:$0xff] 0.0
          %231 = vst [vmem:[#allocation2 + $0xa0] sm:$0xff] 0.0
          %232 = vst [vmem:[#allocation2 + $0xa8] sm:$0xff] 0.0
          %233 = vst [vmem:[#allocation2 + $0xb0] sm:$0xff] 0.0
          %234 = vst [vmem:[#allocation2 + $0xb8] sm:$0xff] 0.0
          %235 = vst [vmem:[#allocation2 + $0xc0] sm:$0xff] 0.0
          %236 = vst [vmem:[#allocation2 + $0xc8] sm:$0xff] 0.0
          %237 = vst [vmem:[#allocation2 + $0xd0] sm:$0xff] 0.0
          %238 = vst [vmem:[#allocation2 + $0xd8] sm:$0xff] 0.0
          %239 = vst [vmem:[#allocation2 + $0xe0] sm:$0xff] 0.0
          %240 = vst [vmem:[#allocation2 + $0xe8] sm:$0xff] 0.0
          %241 = vst [vmem:[#allocation2 + $0xf0] sm:$0xff] 0.0
          %242 = vst [vmem:[#allocation2 + $0xf8] sm:$0xff] 0.0
        $region40: #{tpu_custom_call.1} parent=27 // pred_fallthru
          _
        %v243 = vld [vmem:[%s181] sm:$0xff]
        %v244 = vld [vmem:[%s181 + $0x8] sm:$0xff]
        %v245 = vld [vmem:[%s181 + $0x10] sm:$0xff]
        %v246 = vld [vmem:[%s181 + $0x18] sm:$0xff]
        %v247 = vld [vmem:[%s181 + $0x20] sm:$0xff]
        %v248 = vld [vmem:[%s181 + $0x28] sm:$0xff]
        %v249 = vld [vmem:[%s181 + $0x30] sm:$0xff]
        %v250 = vld [vmem:[%s181 + $0x38] sm:$0xff]
        %v251 = vld [vmem:[%s181 + $0x40] sm:$0xff]
        %v252 = vld [vmem:[%s181 + $0x48] sm:$0xff]
        %v253 = vld [vmem:[%s181 + $0x50] sm:$0xff]
        %v254 = vld [vmem:[%s181 + $0x58] sm:$0xff]
        %v255 = vld [vmem:[%s181 + $0x60] sm:$0xff]
        %v256 = vld [vmem:[%s181 + $0x68] sm:$0xff]
        %v257 = vld [vmem:[%s181 + $0x70] sm:$0xff]
        %v258 = vld [vmem:[%s181 + $0x78] sm:$0xff]
        %v259 = vld [vmem:[%s181 + $0x80] sm:$0xff]
        %v260 = vld [vmem:[%s181 + $0x88] sm:$0xff]
        %v261 = vld [vmem:[%s181 + $0x90] sm:$0xff]
        %v262 = vld [vmem:[%s181 + $0x98] sm:$0xff]
        %v263 = vld [vmem:[%s181 + $0xa0] sm:$0xff]
        %v264 = vld [vmem:[%s181 + $0xa8] sm:$0xff]
        %v265 = vld [vmem:[%s181 + $0xb0] sm:$0xff]
        %v266 = vld [vmem:[%s181 + $0xb8] sm:$0xff]
        %v267 = vld [vmem:[%s181 + $0xc0] sm:$0xff]
        %v268 = vld [vmem:[%s181 + $0xc8] sm:$0xff]
        %v269 = vld [vmem:[%s181 + $0xd0] sm:$0xff]
        %v270 = vld [vmem:[%s181 + $0xd8] sm:$0xff]
        %v271 = vld [vmem:[%s181 + $0xe0] sm:$0xff]
        %v272 = vld [vmem:[%s181 + $0xe8] sm:$0xff]
        %v273 = vld [vmem:[%s181 + $0xf0] sm:$0xff]
        %v274 = vld [vmem:[%s181 + $0xf8] sm:$0xff]
        %v275 = vld [vmem:[%s181 + $0x100] sm:$0xff]
        %v276 = vld [vmem:[%s181 + $0x108] sm:$0xff]
        %v277 = vld [vmem:[%s181 + $0x110] sm:$0xff]
        %v278 = vld [vmem:[%s181 + $0x118] sm:$0xff]
        %v279 = vld [vmem:[%s181 + $0x120] sm:$0xff]
        %v280 = vld [vmem:[%s181 + $0x128] sm:$0xff]
        %v281 = vld [vmem:[%s181 + $0x130] sm:$0xff]
        %v282 = vld [vmem:[%s181 + $0x138] sm:$0xff]
        %v283 = vld [vmem:[%s181 + $0x140] sm:$0xff]
        %v284 = vld [vmem:[%s181 + $0x148] sm:$0xff]
        %v285 = vld [vmem:[%s181 + $0x150] sm:$0xff]
        %v286 = vld [vmem:[%s181 + $0x158] sm:$0xff]
        %v287 = vld [vmem:[%s181 + $0x160] sm:$0xff]
        %v288 = vld [vmem:[%s181 + $0x168] sm:$0xff]
        %v289 = vld [vmem:[%s181 + $0x170] sm:$0xff]
        %v290 = vld [vmem:[%s181 + $0x178] sm:$0xff]
        %v291 = vld [vmem:[%s181 + $0x180] sm:$0xff]
        %v292 = vld [vmem:[%s181 + $0x188] sm:$0xff]
        %v293 = vld [vmem:[%s181 + $0x190] sm:$0xff]
        %v294 = vld [vmem:[%s181 + $0x198] sm:$0xff]
        %v295 = vld [vmem:[%s181 + $0x1a0] sm:$0xff]
        %v296 = vld [vmem:[%s181 + $0x1a8] sm:$0xff]
        %v297 = vld [vmem:[%s181 + $0x1b0] sm:$0xff]
        %v298 = vld [vmem:[%s181 + $0x1b8] sm:$0xff]
        %v299 = vld [vmem:[%s181 + $0x1c0] sm:$0xff]
        %v300 = vld [vmem:[%s181 + $0x1c8] sm:$0xff]
        %v301 = vld [vmem:[%s181 + $0x1d0] sm:$0xff]
        %v302 = vld [vmem:[%s181 + $0x1d8] sm:$0xff]
        %v303 = vld [vmem:[%s181 + $0x1e0] sm:$0xff]
        %v304 = vld [vmem:[%s181 + $0x1e8] sm:$0xff]
        %v305 = vld [vmem:[%s181 + $0x1f0] sm:$0xff]
        %v306 = vld [vmem:[%s181 + $0x1f8] sm:$0xff]
        %v307 = vld [vmem:[%s181 + $0x200] sm:$0xff]
        %v308 = vld [vmem:[%s181 + $0x208] sm:$0xff]
        %v309 = vld [vmem:[%s181 + $0x210] sm:$0xff]
        %v310 = vld [vmem:[%s181 + $0x218] sm:$0xff]
        %v311 = vld [vmem:[%s181 + $0x220] sm:$0xff]
        %v312 = vld [vmem:[%s181 + $0x228] sm:$0xff]
        %v313 = vld [vmem:[%s181 + $0x230] sm:$0xff]
        %v314 = vld [vmem:[%s181 + $0x238] sm:$0xff]
        %v315 = vld [vmem:[%s181 + $0x240] sm:$0xff]
        %v316 = vld [vmem:[%s181 + $0x248] sm:$0xff]
        %v317 = vld [vmem:[%s181 + $0x250] sm:$0xff]
        %v318 = vld [vmem:[%s181 + $0x258] sm:$0xff]
        %v319 = vld [vmem:[%s181 + $0x260] sm:$0xff]
        %v320 = vld [vmem:[%s181 + $0x268] sm:$0xff]
        %v321 = vld [vmem:[%s181 + $0x270] sm:$0xff]
        %v322 = vld [vmem:[%s181 + $0x278] sm:$0xff]
        %v323 = vld [vmem:[%s181 + $0x280] sm:$0xff]
        %v324 = vld [vmem:[%s181 + $0x288] sm:$0xff]
        %v325 = vld [vmem:[%s181 + $0x290] sm:$0xff]
        %v326 = vld [vmem:[%s181 + $0x298] sm:$0xff]
        %v327 = vld [vmem:[%s181 + $0x2a0] sm:$0xff]
        %v328 = vld [vmem:[%s181 + $0x2a8] sm:$0xff]
        %v329 = vld [vmem:[%s181 + $0x2b0] sm:$0xff]
        %v330 = vld [vmem:[%s181 + $0x2b8] sm:$0xff]
        %v331 = vld [vmem:[%s181 + $0x2c0] sm:$0xff]
        %v332 = vld [vmem:[%s181 + $0x2c8] sm:$0xff]
        %v333 = vld [vmem:[%s181 + $0x2d0] sm:$0xff]
        %v334 = vld [vmem:[%s181 + $0x2d8] sm:$0xff]
        %v335 = vld [vmem:[%s181 + $0x2e0] sm:$0xff]
        %v336 = vld [vmem:[%s181 + $0x2e8] sm:$0xff]
        %v337 = vld [vmem:[%s181 + $0x2f0] sm:$0xff]
        %v338 = vld [vmem:[%s181 + $0x2f8] sm:$0xff]
        %v339 = vld [vmem:[%s181 + $0x300] sm:$0xff]
        %v340 = vld [vmem:[%s181 + $0x308] sm:$0xff]
        %v341 = vld [vmem:[%s181 + $0x310] sm:$0xff]
        %v342 = vld [vmem:[%s181 + $0x318] sm:$0xff]
        %v343 = vld [vmem:[%s181 + $0x320] sm:$0xff]
        %v344 = vld [vmem:[%s181 + $0x328] sm:$0xff]
        %v345 = vld [vmem:[%s181 + $0x330] sm:$0xff]
        %v346 = vld [vmem:[%s181 + $0x338] sm:$0xff]
        %v347 = vld [vmem:[%s181 + $0x340] sm:$0xff]
        %v348 = vld [vmem:[%s181 + $0x348] sm:$0xff]
        %v349 = vld [vmem:[%s181 + $0x350] sm:$0xff]
        %v350 = vld [vmem:[%s181 + $0x358] sm:$0xff]
        %v351 = vld [vmem:[%s181 + $0x360] sm:$0xff]
        %v352 = vld [vmem:[%s181 + $0x368] sm:$0xff]
        %v353 = vld [vmem:[%s181 + $0x370] sm:$0xff]
        %v354 = vld [vmem:[%s181 + $0x378] sm:$0xff]
        %v355 = vld [vmem:[%s181 + $0x380] sm:$0xff]
        %v356 = vld [vmem:[%s181 + $0x388] sm:$0xff]
        %v357 = vld [vmem:[%s181 + $0x390] sm:$0xff]
        %v358 = vld [vmem:[%s181 + $0x398] sm:$0xff]
        %v359 = vld [vmem:[%s181 + $0x3a0] sm:$0xff]
        %v360 = vld [vmem:[%s181 + $0x3a8] sm:$0xff]
        %v361 = vld [vmem:[%s181 + $0x3b0] sm:$0xff]
        %v362 = vld [vmem:[%s181 + $0x3b8] sm:$0xff]
        %v363 = vld [vmem:[%s181 + $0x3c0] sm:$0xff]
        %v364 = vld [vmem:[%s181 + $0x3c8] sm:$0xff]
        %v365 = vld [vmem:[%s181 + $0x3d0] sm:$0xff]
        %v366 = vld [vmem:[%s181 + $0x3d8] sm:$0xff]
        %v367 = vld [vmem:[%s181 + $0x3e0] sm:$0xff]
        %v368 = vld [vmem:[%s181 + $0x3e8] sm:$0xff]
        %v369 = vld [vmem:[%s181 + $0x3f0] sm:$0xff]
        %v370 = vld [vmem:[%s181 + $0x3f8] sm:$0xff]
        %v371 = vpack.c.bf16 %v247, %v243
        %v372 = vpack.c.bf16 %v248, %v244
        %v373 = vpack.c.bf16 %v249, %v245
        %v374 = vpack.c.bf16 %v250, %v246
        %v375 = vpack.c.bf16 %v255, %v251
        %v376 = vpack.c.bf16 %v256, %v252
        %v377 = vpack.c.bf16 %v257, %v253
        %v378 = vpack.c.bf16 %v258, %v254
        %v379 = vpack.c.bf16 %v263, %v259
        %v380 = vpack.c.bf16 %v264, %v260
        %v381 = vpack.c.bf16 %v265, %v261
        %v382 = vpack.c.bf16 %v266, %v262
        %v383 = vpack.c.bf16 %v271, %v267
        %v384 = vpack.c.bf16 %v272, %v268
        %v385 = vpack.c.bf16 %v273, %v269
        %v386 = vpack.c.bf16 %v274, %v270
        %v387 = vpack.c.bf16 %v279, %v275
        %v388 = vpack.c.bf16 %v280, %v276
        %v389 = vpack.c.bf16 %v281, %v277
        %v390 = vpack.c.bf16 %v282, %v278
        %v391 = vpack.c.bf16 %v287, %v283
        %v392 = vpack.c.bf16 %v288, %v284
        %v393 = vpack.c.bf16 %v289, %v285
        %v394 = vpack.c.bf16 %v290, %v286
        %v395 = vpack.c.bf16 %v295, %v291
        %v396 = vpack.c.bf16 %v296, %v292
        %v397 = vpack.c.bf16 %v297, %v293
        %v398 = vpack.c.bf16 %v298, %v294
        %v399 = vpack.c.bf16 %v303, %v299
        %v400 = vpack.c.bf16 %v304, %v300
        %v401 = vpack.c.bf16 %v305, %v301
        %v402 = vpack.c.bf16 %v306, %v302
        %v403 = vpack.c.bf16 %v311, %v307
        %v404 = vpack.c.bf16 %v312, %v308
        %v405 = vpack.c.bf16 %v313, %v309
        %v406 = vpack.c.bf16 %v314, %v310
        %v407 = vpack.c.bf16 %v319, %v315
        %v408 = vpack.c.bf16 %v320, %v316
        %v409 = vpack.c.bf16 %v321, %v317
        %v410 = vpack.c.bf16 %v322, %v318
        %v411 = vpack.c.bf16 %v327, %v323
        %v412 = vpack.c.bf16 %v328, %v324
        %v413 = vpack.c.bf16 %v329, %v325
        %v414 = vpack.c.bf16 %v330, %v326
        %v415 = vpack.c.bf16 %v335, %v331
        %v416 = vpack.c.bf16 %v336, %v332
        %v417 = vpack.c.bf16 %v337, %v333
        %v418 = vpack.c.bf16 %v338, %v334
        %v419 = vpack.c.bf16 %v343, %v339
        %v420 = vpack.c.bf16 %v344, %v340
        %v421 = vpack.c.bf16 %v345, %v341
        %v422 = vpack.c.bf16 %v346, %v342
        %v423 = vpack.c.bf16 %v351, %v347
        %v424 = vpack.c.bf16 %v352, %v348
        %v425 = vpack.c.bf16 %v353, %v349
        %v426 = vpack.c.bf16 %v354, %v350
        %v427 = vpack.c.bf16 %v359, %v355
        %v428 = vpack.c.bf16 %v360, %v356
        %v429 = vpack.c.bf16 %v361, %v357
        %v430 = vpack.c.bf16 %v362, %v358
        %v431 = vpack.c.bf16 %v367, %v363
        %v432 = vpack.c.bf16 %v368, %v364
        %v433 = vpack.c.bf16 %v369, %v365
        %v434 = vpack.c.bf16 %v370, %v366
        %v435 = vld [vmem:[#allocation2] sm:$0xff]
        %v436 = vld [vmem:[#allocation2 + $0x8] sm:$0xff]
        %v437 = vld [vmem:[#allocation2 + $0x10] sm:$0xff]
        %v438 = vld [vmem:[#allocation2 + $0x18] sm:$0xff]
        %v439 = vld [vmem:[#allocation2 + $0x20] sm:$0xff]
        %v440 = vld [vmem:[#allocation2 + $0x28] sm:$0xff]
        %v441 = vld [vmem:[#allocation2 + $0x30] sm:$0xff]
        %v442 = vld [vmem:[#allocation2 + $0x38] sm:$0xff]
        %v443 = vld [vmem:[#allocation2 + $0x40] sm:$0xff]
        %v444 = vld [vmem:[#allocation2 + $0x48] sm:$0xff]
        %v445 = vld [vmem:[#allocation2 + $0x50] sm:$0xff]
        %v446 = vld [vmem:[#allocation2 + $0x58] sm:$0xff]
        %v447 = vld [vmem:[#allocation2 + $0x60] sm:$0xff]
        %v448 = vld [vmem:[#allocation2 + $0x68] sm:$0xff]
        %v449 = vld [vmem:[#allocation2 + $0x70] sm:$0xff]
        %v450 = vld [vmem:[#allocation2 + $0x78] sm:$0xff]
        %v451 = vld [vmem:[#allocation2 + $0x80] sm:$0xff]
        %v452 = vld [vmem:[#allocation2 + $0x88] sm:$0xff]
        %v453 = vld [vmem:[#allocation2 + $0x90] sm:$0xff]
        %v454 = vld [vmem:[#allocation2 + $0x98] sm:$0xff]
        %v455 = vld [vmem:[#allocation2 + $0xa0] sm:$0xff]
        %v456 = vld [vmem:[#allocation2 + $0xa8] sm:$0xff]
        %v457 = vld [vmem:[#allocation2 + $0xb0] sm:$0xff]
        %v458 = vld [vmem:[#allocation2 + $0xb8] sm:$0xff]
        %v459 = vld [vmem:[#allocation2 + $0xc0] sm:$0xff]
        %v460 = vld [vmem:[#allocation2 + $0xc8] sm:$0xff]
        %v461 = vld [vmem:[#allocation2 + $0xd0] sm:$0xff]
        %v462 = vld [vmem:[#allocation2 + $0xd8] sm:$0xff]
        %v463 = vld [vmem:[#allocation2 + $0xe0] sm:$0xff]
        %v464 = vld [vmem:[#allocation2 + $0xe8] sm:$0xff]
        %v465 = vld [vmem:[#allocation2 + $0xf0] sm:$0xff]
        %v466 = vld [vmem:[#allocation2 + $0xf8] sm:$0xff]
        %v467 = vld [vmem:[#allocation3] sm:$0xf]
        %v468 = vld [vmem:[#allocation3 + $0x4] sm:$0xf]
        %v469 = vld [vmem:[#allocation3 + $0x8] sm:$0xf]
        %v470 = vld [vmem:[#allocation3 + $0xc] sm:$0xf]
        %v471 = vld [vmem:[#allocation3 + $0x10] sm:$0xf]
        %v472 = vld [vmem:[#allocation3 + $0x14] sm:$0xf]
        %v473 = vld [vmem:[#allocation3 + $0x18] sm:$0xf]
        %v474 = vld [vmem:[#allocation3 + $0x1c] sm:$0xf]
        %v475 = vld [vmem:[#allocation3 + $0x20] sm:$0xf]
        %v476 = vld [vmem:[#allocation3 + $0x24] sm:$0xf]
        %v477 = vld [vmem:[#allocation3 + $0x28] sm:$0xf]
        %v478 = vld [vmem:[#allocation3 + $0x2c] sm:$0xf]
        %v479 = vld [vmem:[#allocation3 + $0x30] sm:$0xf]
        %v480 = vld [vmem:[#allocation3 + $0x34] sm:$0xf]
        %v481 = vld [vmem:[#allocation3 + $0x38] sm:$0xf]
        %v482 = vld [vmem:[#allocation3 + $0x3c] sm:$0xf]
        %v483 = vld [vmem:[#allocation3 + $0x40] sm:$0xf]
        %v484 = vld [vmem:[#allocation3 + $0x44] sm:$0xf]
        %v485 = vld [vmem:[#allocation3 + $0x48] sm:$0xf]
        %v486 = vld [vmem:[#allocation3 + $0x4c] sm:$0xf]
        %v487 = vld [vmem:[#allocation3 + $0x50] sm:$0xf]
        %v488 = vld [vmem:[#allocation3 + $0x54] sm:$0xf]
        %v489 = vld [vmem:[#allocation3 + $0x58] sm:$0xf]
        %v490 = vld [vmem:[#allocation3 + $0x5c] sm:$0xf]
        %v491 = vld [vmem:[#allocation3 + $0x60] sm:$0xf]
        %v492 = vld [vmem:[#allocation3 + $0x64] sm:$0xf]
        %v493 = vld [vmem:[#allocation3 + $0x68] sm:$0xf]
        %v494 = vld [vmem:[#allocation3 + $0x6c] sm:$0xf]
        %v495 = vld [vmem:[#allocation3 + $0x70] sm:$0xf]
        %v496 = vld [vmem:[#allocation3 + $0x74] sm:$0xf]
        %v497 = vld [vmem:[#allocation3 + $0x78] sm:$0xf]
        %v498 = vld [vmem:[#allocation3 + $0x7c] sm:$0xf]
        %v499 = vld [vmem:[#allocation3 + $0x80] sm:$0xf]
        %v500 = vld [vmem:[#allocation3 + $0x84] sm:$0xf]
        %v501 = vld [vmem:[#allocation3 + $0x88] sm:$0xf]
        %v502 = vld [vmem:[#allocation3 + $0x8c] sm:$0xf]
        %v503 = vld [vmem:[#allocation3 + $0x90] sm:$0xf]
        %v504 = vld [vmem:[#allocation3 + $0x94] sm:$0xf]
        %v505 = vld [vmem:[#allocation3 + $0x98] sm:$0xf]
        %v506 = vld [vmem:[#allocation3 + $0x9c] sm:$0xf]
        %v507 = vld [vmem:[#allocation3 + $0xa0] sm:$0xf]
        %v508 = vld [vmem:[#allocation3 + $0xa4] sm:$0xf]
        %v509 = vld [vmem:[#allocation3 + $0xa8] sm:$0xf]
        %v510 = vld [vmem:[#allocation3 + $0xac] sm:$0xf]
        %v511 = vld [vmem:[#allocation3 + $0xb0] sm:$0xf]
        %v512 = vld [vmem:[#allocation3 + $0xb4] sm:$0xf]
        %v513 = vld [vmem:[#allocation3 + $0xb8] sm:$0xf]
        %v514 = vld [vmem:[#allocation3 + $0xbc] sm:$0xf]
        %v515 = vld [vmem:[#allocation3 + $0xc0] sm:$0xf]
        %v516 = vld [vmem:[#allocation3 + $0xc4] sm:$0xf]
        %v517 = vld [vmem:[#allocation3 + $0xc8] sm:$0xf]
        %v518 = vld [vmem:[#allocation3 + $0xcc] sm:$0xf]
        %v519 = vld [vmem:[#allocation3 + $0xd0] sm:$0xf]
        %v520 = vld [vmem:[#allocation3 + $0xd4] sm:$0xf]
        %v521 = vld [vmem:[#allocation3 + $0xd8] sm:$0xf]
        %v522 = vld [vmem:[#allocation3 + $0xdc] sm:$0xf]
        %v523 = vld [vmem:[#allocation3 + $0xe0] sm:$0xf]
        %v524 = vld [vmem:[#allocation3 + $0xe4] sm:$0xf]
        %v525 = vld [vmem:[#allocation3 + $0xe8] sm:$0xf]
        %v526 = vld [vmem:[#allocation3 + $0xec] sm:$0xf]
        %v527 = vld [vmem:[#allocation3 + $0xf0] sm:$0xf]
        %v528 = vld [vmem:[#allocation3 + $0xf4] sm:$0xf]
        %v529 = vld [vmem:[#allocation3 + $0xf8] sm:$0xf]
        %v530 = vld [vmem:[#allocation3 + $0xfc] sm:$0xf]
        %v595 = vunpack.c.l.b16 %v467
        %v596 = vunpack.c.l.b16 %v468
        %v597 = vunpack.c.l.b16 %v469
        %v598 = vunpack.c.l.b16 %v470
        %v599 = vunpack.c.l.b16 %v471
        %v600 = vunpack.c.l.b16 %v472
        %v601 = vunpack.c.l.b16 %v473
        %v602 = vunpack.c.l.b16 %v474
        %v603 = vunpack.c.l.b16 %v475
        %v604 = vunpack.c.l.b16 %v476
        %v605 = vunpack.c.l.b16 %v477
        %v606 = vunpack.c.l.b16 %v478
        %v607 = vunpack.c.l.b16 %v479
        %v608 = vunpack.c.l.b16 %v480
        %v609 = vunpack.c.l.b16 %v481
        %v610 = vunpack.c.l.b16 %v482
        %v611 = vunpack.c.l.b16 %v483
        %v612 = vunpack.c.l.b16 %v484
        %v613 = vunpack.c.l.b16 %v485
        %v614 = vunpack.c.l.b16 %v486
        %v615 = vunpack.c.l.b16 %v487
        %v616 = vunpack.c.l.b16 %v488
        %v617 = vunpack.c.l.b16 %v489
        %v618 = vunpack.c.l.b16 %v490
        %v619 = vunpack.c.l.b16 %v491
        %v620 = vunpack.c.l.b16 %v492
        %v621 = vunpack.c.l.b16 %v493
        %v622 = vunpack.c.l.b16 %v494
        %v623 = vunpack.c.l.b16 %v495
        %v624 = vunpack.c.l.b16 %v496
        %v625 = vunpack.c.l.b16 %v497
        %v626 = vunpack.c.l.b16 %v498
        %v627 = vunpack.c.l.b16 %v499
        %v628 = vunpack.c.l.b16 %v500
        %v629 = vunpack.c.l.b16 %v501
        %v630 = vunpack.c.l.b16 %v502
        %v631 = vunpack.c.l.b16 %v503
        %v632 = vunpack.c.l.b16 %v504
        %v633 = vunpack.c.l.b16 %v505
        %v634 = vunpack.c.l.b16 %v506
        %v635 = vunpack.c.l.b16 %v507
        %v636 = vunpack.c.l.b16 %v508
        %v637 = vunpack.c.l.b16 %v509
        %v638 = vunpack.c.l.b16 %v510
        %v639 = vunpack.c.l.b16 %v511
        %v640 = vunpack.c.l.b16 %v512
        %v641 = vunpack.c.l.b16 %v513
        %v642 = vunpack.c.l.b16 %v514
        %v643 = vunpack.c.l.b16 %v515
        %v644 = vunpack.c.l.b16 %v516
        %v645 = vunpack.c.l.b16 %v517
        %v646 = vunpack.c.l.b16 %v518
        %v647 = vunpack.c.l.b16 %v519
        %v648 = vunpack.c.l.b16 %v520
        %v649 = vunpack.c.l.b16 %v521
        %v650 = vunpack.c.l.b16 %v522
        %v651 = vunpack.c.l.b16 %v523
        %v652 = vunpack.c.l.b16 %v524
        %v653 = vunpack.c.l.b16 %v525
        %v654 = vunpack.c.l.b16 %v526
        %v655 = vunpack.c.l.b16 %v527
        %v656 = vunpack.c.l.b16 %v528
        %v657 = vunpack.c.l.b16 %v529
        %v658 = vunpack.c.l.b16 %v530
        %v659 = vpack.c.b16 %v596, %v595
        %v660 = vpack.c.b16 %v598, %v597
        %v661 = vpack.c.b16 %v600, %v599
        %v662 = vpack.c.b16 %v602, %v601
        %v663 = vpack.c.b16 %v604, %v603
        %v664 = vpack.c.b16 %v606, %v605
        %v665 = vpack.c.b16 %v608, %v607
        %v666 = vpack.c.b16 %v610, %v609
        %v667 = vpack.c.b16 %v612, %v611
        %v668 = vpack.c.b16 %v614, %v613
        %v669 = vpack.c.b16 %v616, %v615
        %v670 = vpack.c.b16 %v618, %v617
        %v671 = vpack.c.b16 %v620, %v619
        %v672 = vpack.c.b16 %v622, %v621
        %v673 = vpack.c.b16 %v624, %v623
        %v674 = vpack.c.b16 %v626, %v625
        %v675 = vpack.c.b16 %v628, %v627
        %v676 = vpack.c.b16 %v630, %v629
        %v677 = vpack.c.b16 %v632, %v631
        %v678 = vpack.c.b16 %v634, %v633
        %v679 = vpack.c.b16 %v636, %v635
        %v680 = vpack.c.b16 %v638, %v637
        %v681 = vpack.c.b16 %v640, %v639
        %v682 = vpack.c.b16 %v642, %v641
        %v683 = vpack.c.b16 %v644, %v643
        %v684 = vpack.c.b16 %v646, %v645
        %v685 = vpack.c.b16 %v648, %v647
        %v686 = vpack.c.b16 %v650, %v649
        %v687 = vpack.c.b16 %v652, %v651
        %v688 = vpack.c.b16 %v654, %v653
        %v689 = vpack.c.b16 %v656, %v655
        %v690 = vpack.c.b16 %v658, %v657
        %723 = vmatprep.subr.bf16.mxu0 0
        %724 = vmatpush1.bf16.msra.mxu0 %v666
        %725 = vmatprep.subr.bf16.mxu0 0
        %726 = vmatpush1.bf16.msra.mxu0 %v665
        %727 = vmatprep.subr.bf16.mxu0 0
        %728 = vmatpush1.bf16.msra.mxu0 %v664
        %729 = vmatprep.subr.bf16.mxu0 0
        %730 = vmatpush1.bf16.msra.mxu0 %v663
        %731 = vmatprep.subr.bf16.mxu0 0
        %732 = vmatpush1.bf16.msra.mxu0 %v662
        %733 = vmatprep.subr.bf16.mxu0 0
        %734 = vmatpush1.bf16.msra.mxu0 %v661
        %735 = vmatprep.subr.bf16.mxu0 0
        %736 = vmatpush1.bf16.msra.mxu0 %v660
        %737 = vmatprep.subr.bf16.mxu0 0
        %738 = vmatpush1.bf16.msra.mxu0 %v659
        %739 = vmatprep.subr.bf16.mxu0 0
        %740 = vmatpush2.bf16.msra.mxu0 %v674
        %741 = vmatprep.subr.bf16.mxu0 0
        %742 = vmatpush2.bf16.msra.mxu0 %v673
        %743 = vmatprep.subr.bf16.mxu0 0
        %744 = vmatpush2.bf16.msra.mxu0 %v672
        %745 = vmatprep.subr.bf16.mxu0 0
        %746 = vmatpush2.bf16.msra.mxu0 %v671
        %747 = vmatprep.subr.bf16.mxu0 0
        %748 = vmatpush2.bf16.msra.mxu0 %v670
        %749 = vmatprep.subr.bf16.mxu0 0
        %750 = vmatpush2.bf16.msra.mxu0 %v669
        %751 = vmatprep.subr.bf16.mxu0 0
        %752 = vmatpush2.bf16.msra.mxu0 %v668
        %753 = vmatprep.subr.bf16.mxu0 0
        %754 = vmatpush2.bf16.msra.mxu0 %v667
        %755 = vmatprep.mubr.bf16.mxu0 %v372
        %756 = vmatmul.mubr.bf16.gmra.mxu0 %v371
        %v757 = vpop.f32.mrf.mxu0
        %v758 = vadd.f32 0.0, %v757
        %v759 = vpop.f32.mrf.mxu0
        %v760 = vpop.f32.mrf.mxu0
        %v761 = vadd.f32 0.0, %v760
        %v762 = vpop.f32.mrf.mxu0
        %763 = vmatprep.mubr.bf16.mxu0 %v376
        %764 = vmatmul.mubr.bf16.gmra.mxu0 %v375
        %v765 = vpop.f32.mrf.mxu0
        %v766 = vadd.f32 0.0, %v765
        %v767 = vpop.f32.mrf.mxu0
        %v768 = vpop.f32.mrf.mxu0
        %v769 = vadd.f32 0.0, %v768
        %v770 = vpop.f32.mrf.mxu0
        %771 = vmatprep.mubr.bf16.mxu0 %v380
        %772 = vmatmul.mubr.bf16.gmra.mxu0 %v379
        %v773 = vpop.f32.mrf.mxu0
        %v774 = vadd.f32 0.0, %v773
        %v775 = vpop.f32.mrf.mxu0
        %v776 = vpop.f32.mrf.mxu0
        %v777 = vadd.f32 0.0, %v776
        %v778 = vpop.f32.mrf.mxu0
        %779 = vmatprep.mubr.bf16.mxu0 %v384
        %780 = vmatmul.mubr.bf16.gmra.mxu0 %v383
        %v781 = vpop.f32.mrf.mxu0
        %v782 = vadd.f32 0.0, %v781
        %v783 = vpop.f32.mrf.mxu0
        %v784 = vpop.f32.mrf.mxu0
        %v785 = vadd.f32 0.0, %v784
        %v786 = vpop.f32.mrf.mxu0
        %787 = vmatprep.mubr.bf16.mxu0 %v388
        %788 = vmatmul.mubr.bf16.gmra.mxu0 %v387
        %v789 = vpop.f32.mrf.mxu0
        %v790 = vadd.f32 0.0, %v789
        %v791 = vpop.f32.mrf.mxu0
        %v792 = vpop.f32.mrf.mxu0
        %v793 = vadd.f32 0.0, %v792
        %v794 = vpop.f32.mrf.mxu0
        %795 = vmatprep.mubr.bf16.mxu0 %v392
        %796 = vmatmul.mubr.bf16.gmra.mxu0 %v391
        %v797 = vpop.f32.mrf.mxu0
        %v798 = vadd.f32 0.0, %v797
        %v799 = vpop.f32.mrf.mxu0
        %v800 = vpop.f32.mrf.mxu0
        %v801 = vadd.f32 0.0, %v800
        %v802 = vpop.f32.mrf.mxu0
        %803 = vmatprep.mubr.bf16.mxu0 %v396
        %804 = vmatmul.mubr.bf16.gmra.mxu0 %v395
        %v805 = vpop.f32.mrf.mxu0
        %v806 = vadd.f32 0.0, %v805
        %v807 = vpop.f32.mrf.mxu0
        %v808 = vpop.f32.mrf.mxu0
        %v809 = vadd.f32 0.0, %v808
        %v810 = vpop.f32.mrf.mxu0
        %811 = vmatprep.mubr.bf16.mxu0 %v400
        %812 = vmatmul.mubr.bf16.gmra.mxu0 %v399
        %v813 = vpop.f32.mrf.mxu0
        %v814 = vadd.f32 0.0, %v813
        %v815 = vpop.f32.mrf.mxu0
        %v816 = vpop.f32.mrf.mxu0
        %v817 = vadd.f32 0.0, %v816
        %v818 = vpop.f32.mrf.mxu0
        %819 = vmatprep.mubr.bf16.mxu0 %v404
        %820 = vmatmul.mubr.bf16.gmra.mxu0 %v403
        %v821 = vpop.f32.mrf.mxu0
        %v822 = vadd.f32 0.0, %v821
        %v823 = vpop.f32.mrf.mxu0
        %v824 = vpop.f32.mrf.mxu0
        %v825 = vadd.f32 0.0, %v824
        %v826 = vpop.f32.mrf.mxu0
        %827 = vmatprep.mubr.bf16.mxu0 %v408
        %828 = vmatmul.mubr.bf16.gmra.mxu0 %v407
        %v829 = vpop.f32.mrf.mxu0
        %v830 = vadd.f32 0.0, %v829
        %v831 = vpop.f32.mrf.mxu0
        %v832 = vpop.f32.mrf.mxu0
        %v833 = vadd.f32 0.0, %v832
        %v834 = vpop.f32.mrf.mxu0
        %835 = vmatprep.mubr.bf16.mxu0 %v412
        %836 = vmatmul.mubr.bf16.gmra.mxu0 %v411
        %v837 = vpop.f32.mrf.mxu0
        %v838 = vadd.f32 0.0, %v837
        %v839 = vpop.f32.mrf.mxu0
        %v840 = vpop.f32.mrf.mxu0
        %v841 = vadd.f32 0.0, %v840
        %v842 = vpop.f32.mrf.mxu0
        %843 = vmatprep.mubr.bf16.mxu0 %v416
        %844 = vmatmul.mubr.bf16.gmra.mxu0 %v415
        %v845 = vpop.f32.mrf.mxu0
        %v846 = vadd.f32 0.0, %v845
        %v847 = vpop.f32.mrf.mxu0
        %v848 = vpop.f32.mrf.mxu0
        %v849 = vadd.f32 0.0, %v848
        %v850 = vpop.f32.mrf.mxu0
        %851 = vmatprep.mubr.bf16.mxu0 %v420
        %852 = vmatmul.mubr.bf16.gmra.mxu0 %v419
        %v853 = vpop.f32.mrf.mxu0
        %v854 = vadd.f32 0.0, %v853
        %v855 = vpop.f32.mrf.mxu0
        %v856 = vpop.f32.mrf.mxu0
        %v857 = vadd.f32 0.0, %v856
        %v858 = vpop.f32.mrf.mxu0
        %859 = vmatprep.mubr.bf16.mxu0 %v424
        %860 = vmatmul.mubr.bf16.gmra.mxu0 %v423
        %v861 = vpop.f32.mrf.mxu0
        %v862 = vadd.f32 0.0, %v861
        %v863 = vpop.f32.mrf.mxu0
        %v864 = vpop.f32.mrf.mxu0
        %v865 = vadd.f32 0.0, %v864
        %v866 = vpop.f32.mrf.mxu0
        %867 = vmatprep.mubr.bf16.mxu0 %v428
        %868 = vmatmul.mubr.bf16.gmra.mxu0 %v427
        %v869 = vpop.f32.mrf.mxu0
        %v870 = vadd.f32 0.0, %v869
        %v871 = vpop.f32.mrf.mxu0
        %v872 = vpop.f32.mrf.mxu0
        %v873 = vadd.f32 0.0, %v872
        %v874 = vpop.f32.mrf.mxu0
        %875 = vmatprep.mubr.bf16.mxu0 %v432
        %876 = vmatmul.mubr.bf16.gmra.mxu0 %v431
        %v877 = vpop.f32.mrf.mxu0
        %v878 = vadd.f32 0.0, %v877
        %v879 = vpop.f32.mrf.mxu0
        %v880 = vpop.f32.mrf.mxu0
        %v881 = vadd.f32 0.0, %v880
        %v882 = vpop.f32.mrf.mxu0
        %883 = vdwg.mxu0
        %884 = vmatprep.subr.bf16.mxu0 0
        %885 = vmatpush1.bf16.msra.mxu0 %v682
        %886 = vmatprep.subr.bf16.mxu0 0
        %887 = vmatpush1.bf16.msra.mxu0 %v681
        %888 = vmatprep.subr.bf16.mxu0 0
        %889 = vmatpush1.bf16.msra.mxu0 %v680
        %890 = vmatprep.subr.bf16.mxu0 0
        %891 = vmatpush1.bf16.msra.mxu0 %v679
        %892 = vmatprep.subr.bf16.mxu0 0
        %893 = vmatpush1.bf16.msra.mxu0 %v678
        %894 = vmatprep.subr.bf16.mxu0 0
        %895 = vmatpush1.bf16.msra.mxu0 %v677
        %896 = vmatprep.subr.bf16.mxu0 0
        %897 = vmatpush1.bf16.msra.mxu0 %v676
        %898 = vmatprep.subr.bf16.mxu0 0
        %899 = vmatpush1.bf16.msra.mxu0 %v675
        %900 = vmatprep.subr.bf16.mxu0 0
        %901 = vmatpush2.bf16.msra.mxu0 %v690
        %902 = vmatprep.subr.bf16.mxu0 0
        %903 = vmatpush2.bf16.msra.mxu0 %v689
        %904 = vmatprep.subr.bf16.mxu0 0
        %905 = vmatpush2.bf16.msra.mxu0 %v688
        %906 = vmatprep.subr.bf16.mxu0 0
        %907 = vmatpush2.bf16.msra.mxu0 %v687
        %908 = vmatprep.subr.bf16.mxu0 0
        %909 = vmatpush2.bf16.msra.mxu0 %v686
        %910 = vmatprep.subr.bf16.mxu0 0
        %911 = vmatpush2.bf16.msra.mxu0 %v685
        %912 = vmatprep.subr.bf16.mxu0 0
        %913 = vmatpush2.bf16.msra.mxu0 %v684
        %914 = vmatprep.subr.bf16.mxu0 0
        %915 = vmatpush2.bf16.msra.mxu0 %v683
        %916 = vmatprep.mubr.bf16.mxu0 %v374
        %917 = vmatmul.mubr.bf16.gmra.mxu0 %v373
        %v918 = vpop.f32.mrf.mxu0
        %v919 = vadd.f32 %v758, %v918
        %v920 = vpop.f32.mrf.mxu0
        %v921 = vpop.f32.mrf.mxu0
        %v922 = vadd.f32 %v761, %v921
        %v923 = vpop.f32.mrf.mxu0
        %924 = vmatprep.mubr.bf16.mxu0 %v378
        %925 = vmatmul.mubr.bf16.gmra.mxu0 %v377
        %v926 = vpop.f32.mrf.mxu0
        %v927 = vadd.f32 %v766, %v926
        %v928 = vpop.f32.mrf.mxu0
        %v929 = vpop.f32.mrf.mxu0
        %v930 = vadd.f32 %v769, %v929
        %v931 = vpop.f32.mrf.mxu0
        %932 = vmatprep.mubr.bf16.mxu0 %v382
        %933 = vmatmul.mubr.bf16.gmra.mxu0 %v381
        %v934 = vpop.f32.mrf.mxu0
        %v935 = vadd.f32 %v774, %v934
        %v936 = vpop.f32.mrf.mxu0
        %v937 = vpop.f32.mrf.mxu0
        %v938 = vadd.f32 %v777, %v937
        %v939 = vpop.f32.mrf.mxu0
        %940 = vmatprep.mubr.bf16.mxu0 %v386
        %941 = vmatmul.mubr.bf16.gmra.mxu0 %v385
        %v942 = vpop.f32.mrf.mxu0
        %v943 = vadd.f32 %v782, %v942
        %v944 = vpop.f32.mrf.mxu0
        %v945 = vpop.f32.mrf.mxu0
        %v946 = vadd.f32 %v785, %v945
        %v947 = vpop.f32.mrf.mxu0
        %948 = vmatprep.mubr.bf16.mxu0 %v390
        %949 = vmatmul.mubr.bf16.gmra.mxu0 %v389
        %v950 = vpop.f32.mrf.mxu0
        %v951 = vadd.f32 %v790, %v950
        %v952 = vpop.f32.mrf.mxu0
        %v953 = vpop.f32.mrf.mxu0
        %v954 = vadd.f32 %v793, %v953
        %v955 = vpop.f32.mrf.mxu0
        %956 = vmatprep.mubr.bf16.mxu0 %v394
        %957 = vmatmul.mubr.bf16.gmra.mxu0 %v393
        %v958 = vpop.f32.mrf.mxu0
        %v959 = vadd.f32 %v798, %v958
        %v960 = vpop.f32.mrf.mxu0
        %v961 = vpop.f32.mrf.mxu0
        %v962 = vadd.f32 %v801, %v961
        %v963 = vpop.f32.mrf.mxu0
        %964 = vmatprep.mubr.bf16.mxu0 %v398
        %965 = vmatmul.mubr.bf16.gmra.mxu0 %v397
        %v966 = vpop.f32.mrf.mxu0
        %v967 = vadd.f32 %v806, %v966
        %v968 = vpop.f32.mrf.mxu0
        %v969 = vpop.f32.mrf.mxu0
        %v970 = vadd.f32 %v809, %v969
        %v971 = vpop.f32.mrf.mxu0
        %972 = vmatprep.mubr.bf16.mxu0 %v402
        %973 = vmatmul.mubr.bf16.gmra.mxu0 %v401
        %v974 = vpop.f32.mrf.mxu0
        %v975 = vadd.f32 %v814, %v974
        %v976 = vpop.f32.mrf.mxu0
        %v977 = vpop.f32.mrf.mxu0
        %v978 = vadd.f32 %v817, %v977
        %v979 = vpop.f32.mrf.mxu0
        %980 = vmatprep.mubr.bf16.mxu0 %v406
        %981 = vmatmul.mubr.bf16.gmra.mxu0 %v405
        %v982 = vpop.f32.mrf.mxu0
        %v983 = vadd.f32 %v822, %v982
        %v984 = vpop.f32.mrf.mxu0
        %v985 = vpop.f32.mrf.mxu0
        %v986 = vadd.f32 %v825, %v985
        %v987 = vpop.f32.mrf.mxu0
        %988 = vmatprep.mubr.bf16.mxu0 %v410
        %989 = vmatmul.mubr.bf16.gmra.mxu0 %v409
        %v990 = vpop.f32.mrf.mxu0
        %v991 = vadd.f32 %v830, %v990
        %v992 = vpop.f32.mrf.mxu0
        %v993 = vpop.f32.mrf.mxu0
        %v994 = vadd.f32 %v833, %v993
        %v995 = vpop.f32.mrf.mxu0
        %996 = vmatprep.mubr.bf16.mxu0 %v414
        %997 = vmatmul.mubr.bf16.gmra.mxu0 %v413
        %v998 = vpop.f32.mrf.mxu0
        %v999 = vadd.f32 %v838, %v998
        %v1000 = vpop.f32.mrf.mxu0
        %v1001 = vpop.f32.mrf.mxu0
        %v1002 = vadd.f32 %v841, %v1001
        %v1003 = vpop.f32.mrf.mxu0
        %1004 = vmatprep.mubr.bf16.mxu0 %v418
        %1005 = vmatmul.mubr.bf16.gmra.mxu0 %v417
        %v1006 = vpop.f32.mrf.mxu0
        %v1007 = vadd.f32 %v846, %v1006
        %v1008 = vpop.f32.mrf.mxu0
        %v1009 = vpop.f32.mrf.mxu0
        %v1010 = vadd.f32 %v849, %v1009
        %v1011 = vpop.f32.mrf.mxu0
        %1012 = vmatprep.mubr.bf16.mxu0 %v422
        %1013 = vmatmul.mubr.bf16.gmra.mxu0 %v421
        %v1014 = vpop.f32.mrf.mxu0
        %v1015 = vadd.f32 %v854, %v1014
        %v1016 = vpop.f32.mrf.mxu0
        %v1017 = vpop.f32.mrf.mxu0
        %v1018 = vadd.f32 %v857, %v1017
        %v1019 = vpop.f32.mrf.mxu0
        %1020 = vmatprep.mubr.bf16.mxu0 %v426
        %1021 = vmatmul.mubr.bf16.gmra.mxu0 %v425
        %v1022 = vpop.f32.mrf.mxu0
        %v1023 = vadd.f32 %v862, %v1022
        %v1024 = vpop.f32.mrf.mxu0
        %v1025 = vpop.f32.mrf.mxu0
        %v1026 = vadd.f32 %v865, %v1025
        %v1027 = vpop.f32.mrf.mxu0
        %1028 = vmatprep.mubr.bf16.mxu0 %v430
        %1029 = vmatmul.mubr.bf16.gmra.mxu0 %v429
        %v1030 = vpop.f32.mrf.mxu0
        %v1031 = vadd.f32 %v870, %v1030
        %v1032 = vpop.f32.mrf.mxu0
        %v1033 = vpop.f32.mrf.mxu0
        %v1034 = vadd.f32 %v873, %v1033
        %v1035 = vpop.f32.mrf.mxu0
        %1036 = vmatprep.mubr.bf16.mxu0 %v434
        %1037 = vmatmul.mubr.bf16.gmra.mxu0 %v433
        %v1038 = vpop.f32.mrf.mxu0
        %v1039 = vadd.f32 %v878, %v1038
        %v1040 = vpop.f32.mrf.mxu0
        %v1041 = vpop.f32.mrf.mxu0
        %v1042 = vadd.f32 %v881, %v1041
        %v1043 = vpop.f32.mrf.mxu0
        %1044 = vdwg.mxu0
        %v1045 = vadd.f32 %v435, %v919
        %v1046 = vadd.f32 %v436, %v922
        %v1047 = vadd.f32 %v437, %v927
        %v1048 = vadd.f32 %v438, %v930
        %v1049 = vadd.f32 %v439, %v935
        %v1050 = vadd.f32 %v440, %v938
        %v1051 = vadd.f32 %v441, %v943
        %v1052 = vadd.f32 %v442, %v946
        %v1053 = vadd.f32 %v443, %v951
        %v1054 = vadd.f32 %v444, %v954
        %v1055 = vadd.f32 %v445, %v959
        %v1056 = vadd.f32 %v446, %v962
        %v1057 = vadd.f32 %v447, %v967
        %v1058 = vadd.f32 %v448, %v970
        %v1059 = vadd.f32 %v449, %v975
        %v1060 = vadd.f32 %v450, %v978
        %v1061 = vadd.f32 %v451, %v983
        %v1062 = vadd.f32 %v452, %v986
        %v1063 = vadd.f32 %v453, %v991
        %v1064 = vadd.f32 %v454, %v994
        %v1065 = vadd.f32 %v455, %v999
        %v1066 = vadd.f32 %v456, %v1002
        %v1067 = vadd.f32 %v457, %v1007
        %v1068 = vadd.f32 %v458, %v1010
        %v1069 = vadd.f32 %v459, %v1015
        %v1070 = vadd.f32 %v460, %v1018
        %v1071 = vadd.f32 %v461, %v1023
        %v1072 = vadd.f32 %v462, %v1026
        %v1073 = vadd.f32 %v463, %v1031
        %v1074 = vadd.f32 %v464, %v1034
        %v1075 = vadd.f32 %v465, %v1039
        %v1076 = vadd.f32 %v466, %v1042
        %1077 = vst [vmem:[#allocation2] sm:$0xff] %v1045
        %1078 = vst [vmem:[#allocation2 + $0x8] sm:$0xff] %v1046
        %1079 = vst [vmem:[#allocation2 + $0x10] sm:$0xff] %v1047
        %1080 = vst [vmem:[#allocation2 + $0x18] sm:$0xff] %v1048
        %1081 = vst [vmem:[#allocation2 + $0x20] sm:$0xff] %v1049
        %1082 = vst [vmem:[#allocation2 + $0x28] sm:$0xff] %v1050
        %1083 = vst [vmem:[#allocation2 + $0x30] sm:$0xff] %v1051
        %1084 = vst [vmem:[#allocation2 + $0x38] sm:$0xff] %v1052
        %1085 = vst [vmem:[#allocation2 + $0x40] sm:$0xff] %v1053
        %1086 = vst [vmem:[#allocation2 + $0x48] sm:$0xff] %v1054
        %1087 = vst [vmem:[#allocation2 + $0x50] sm:$0xff] %v1055
        %1088 = vst [vmem:[#allocation2 + $0x58] sm:$0xff] %v1056
        %1089 = vst [vmem:[#allocation2 + $0x60] sm:$0xff] %v1057
        %1090 = vst [vmem:[#allocation2 + $0x68] sm:$0xff] %v1058
        %1091 = vst [vmem:[#allocation2 + $0x70] sm:$0xff] %v1059
        %1092 = vst [vmem:[#allocation2 + $0x78] sm:$0xff] %v1060
        %1093 = vst [vmem:[#allocation2 + $0x80] sm:$0xff] %v1061
        %1094 = vst [vmem:[#allocation2 + $0x88] sm:$0xff] %v1062
        %1095 = vst [vmem:[#allocation2 + $0x90] sm:$0xff] %v1063
        %1096 = vst [vmem:[#allocation2 + $0x98] sm:$0xff] %v1064
        %1097 = vst [vmem:[#allocation2 + $0xa0] sm:$0xff] %v1065
        %1098 = vst [vmem:[#allocation2 + $0xa8] sm:$0xff] %v1066
        %1099 = vst [vmem:[#allocation2 + $0xb0] sm:$0xff] %v1067
        %1100 = vst [vmem:[#allocation2 + $0xb8] sm:$0xff] %v1068
        %1101 = vst [vmem:[#allocation2 + $0xc0] sm:$0xff] %v1069
        %1102 = vst [vmem:[#allocation2 + $0xc8] sm:$0xff] %v1070
        %1103 = vst [vmem:[#allocation2 + $0xd0] sm:$0xff] %v1071
        %1104 = vst [vmem:[#allocation2 + $0xd8] sm:$0xff] %v1072
        %1105 = vst [vmem:[#allocation2 + $0xe0] sm:$0xff] %v1073
        %1106 = vst [vmem:[#allocation2 + $0xe8] sm:$0xff] %v1074
        %1107 = vst [vmem:[#allocation2 + $0xf0] sm:$0xff] %v1075
        %1108 = vst [vmem:[#allocation2 + $0xf8] sm:$0xff] %v1076
        // Predicated region
        $region41: #{tpu_custom_call.1} parent=27 // pred_check
          %p1109 = pneg %p207
        $region42: #{tpu_custom_call.1} parent=27 // pred_check_branch
          %1111 = sbr.rel (%p1109) target = $region44
        $region43: #{tpu_custom_call.1} parent=27 // pred_region
          %v1112 = vld [vmem:[#allocation2] sm:$0xff]
          %v1113 = vld [vmem:[#allocation2 + $0x8] sm:$0xff]
          %v1114 = vld [vmem:[#allocation2 + $0x10] sm:$0xff]
          %v1115 = vld [vmem:[#allocation2 + $0x18] sm:$0xff]
          %v1116 = vld [vmem:[#allocation2 + $0x20] sm:$0xff]
          %v1117 = vld [vmem:[#allocation2 + $0x28] sm:$0xff]
          %v1118 = vld [vmem:[#allocation2 + $0x30] sm:$0xff]
          %v1119 = vld [vmem:[#allocation2 + $0x38] sm:$0xff]
          %v1120 = vld [vmem:[#allocation2 + $0x40] sm:$0xff]
          %v1121 = vld [vmem:[#allocation2 + $0x48] sm:$0xff]
          %v1122 = vld [vmem:[#allocation2 + $0x50] sm:$0xff]
          %v1123 = vld [vmem:[#allocation2 + $0x58] sm:$0xff]
          %v1124 = vld [vmem:[#allocation2 + $0x60] sm:$0xff]
          %v1125 = vld [vmem:[#allocation2 + $0x68] sm:$0xff]
          %v1126 = vld [vmem:[#allocation2 + $0x70] sm:$0xff]
          %v1127 = vld [vmem:[#allocation2 + $0x78] sm:$0xff]
          %v1128 = vld [vmem:[#allocation2 + $0x80] sm:$0xff]
          %v1129 = vld [vmem:[#allocation2 + $0x88] sm:$0xff]
          %v1130 = vld [vmem:[#allocation2 + $0x90] sm:$0xff]
          %v1131 = vld [vmem:[#allocation2 + $0x98] sm:$0xff]
          %v1132 = vld [vmem:[#allocation2 + $0xa0] sm:$0xff]
          %v1133 = vld [vmem:[#allocation2 + $0xa8] sm:$0xff]
          %v1134 = vld [vmem:[#allocation2 + $0xb0] sm:$0xff]
          %v1135 = vld [vmem:[#allocation2 + $0xb8] sm:$0xff]
          %v1136 = vld [vmem:[#allocation2 + $0xc0] sm:$0xff]
          %v1137 = vld [vmem:[#allocation2 + $0xc8] sm:$0xff]
          %v1138 = vld [vmem:[#allocation2 + $0xd0] sm:$0xff]
          %v1139 = vld [vmem:[#allocation2 + $0xd8] sm:$0xff]
          %v1140 = vld [vmem:[#allocation2 + $0xe0] sm:$0xff]
          %v1141 = vld [vmem:[#allocation2 + $0xe8] sm:$0xff]
          %v1142 = vld [vmem:[#allocation2 + $0xf0] sm:$0xff]
          %v1143 = vld [vmem:[#allocation2 + $0xf8] sm:$0xff]
          %vm1144 = vcmp.gt.f32.partialorder %v1112, 0.0
          %vm1145 = vcmp.gt.f32.partialorder %v1113, 0.0
          %vm1146 = vcmp.gt.f32.partialorder %v1114, 0.0
          %vm1147 = vcmp.gt.f32.partialorder %v1115, 0.0
          %vm1148 = vcmp.gt.f32.partialorder %v1116, 0.0
          %vm1149 = vcmp.gt.f32.partialorder %v1117, 0.0
          %vm1150 = vcmp.gt.f32.partialorder %v1118, 0.0
          %vm1151 = vcmp.gt.f32.partialorder %v1119, 0.0
          %vm1152 = vcmp.gt.f32.partialorder %v1120, 0.0
          %vm1153 = vcmp.gt.f32.partialorder %v1121, 0.0
          %vm1154 = vcmp.gt.f32.partialorder %v1122, 0.0
          %vm1155 = vcmp.gt.f32.partialorder %v1123, 0.0
          %vm1156 = vcmp.gt.f32.partialorder %v1124, 0.0
          %vm1157 = vcmp.gt.f32.partialorder %v1125, 0.0
          %vm1158 = vcmp.gt.f32.partialorder %v1126, 0.0
          %vm1159 = vcmp.gt.f32.partialorder %v1127, 0.0
          %vm1160 = vcmp.gt.f32.partialorder %v1128, 0.0
          %vm1161 = vcmp.gt.f32.partialorder %v1129, 0.0
          %vm1162 = vcmp.gt.f32.partialorder %v1130, 0.0
          %vm1163 = vcmp.gt.f32.partialorder %v1131, 0.0
          %vm1164 = vcmp.gt.f32.partialorder %v1132, 0.0
          %vm1165 = vcmp.gt.f32.partialorder %v1133, 0.0
          %vm1166 = vcmp.gt.f32.partialorder %v1134, 0.0
          %vm1167 = vcmp.gt.f32.partialorder %v1135, 0.0
          %vm1168 = vcmp.gt.f32.partialorder %v1136, 0.0
          %vm1169 = vcmp.gt.f32.partialorder %v1137, 0.0
          %vm1170 = vcmp.gt.f32.partialorder %v1138, 0.0
          %vm1171 = vcmp.gt.f32.partialorder %v1139, 0.0
          %vm1172 = vcmp.gt.f32.partialorder %v1140, 0.0
          %vm1173 = vcmp.gt.f32.partialorder %v1141, 0.0
          %vm1174 = vcmp.gt.f32.partialorder %v1142, 0.0
          %vm1175 = vcmp.gt.f32.partialorder %v1143, 0.0
          %v1176 = vmul.f32 %v1112, 0.2
          %v1177 = vmul.f32 %v1113, 0.2
          %v1178 = vmul.f32 %v1114, 0.2
          %v1179 = vmul.f32 %v1115, 0.2
          %v1180 = vmul.f32 %v1116, 0.2
          %v1181 = vmul.f32 %v1117, 0.2
          %v1182 = vmul.f32 %v1118, 0.2
          %v1183 = vmul.f32 %v1119, 0.2
          %v1184 = vmul.f32 %v1120, 0.2
          %v1185 = vmul.f32 %v1121, 0.2
          %v1186 = vmul.f32 %v1122, 0.2
          %v1187 = vmul.f32 %v1123, 0.2
          %v1188 = vmul.f32 %v1124, 0.2
          %v1189 = vmul.f32 %v1125, 0.2
          %v1190 = vmul.f32 %v1126, 0.2
          %v1191 = vmul.f32 %v1127, 0.2
          %v1192 = vmul.f32 %v1128, 0.2
          %v1193 = vmul.f32 %v1129, 0.2
          %v1194 = vmul.f32 %v1130, 0.2
          %v1195 = vmul.f32 %v1131, 0.2
          %v1196 = vmul.f32 %v1132, 0.2
          %v1197 = vmul.f32 %v1133, 0.2
          %v1198 = vmul.f32 %v1134, 0.2
          %v1199 = vmul.f32 %v1135, 0.2
          %v1200 = vmul.f32 %v1136, 0.2
          %v1201 = vmul.f32 %v1137, 0.2
          %v1202 = vmul.f32 %v1138, 0.2
          %v1203 = vmul.f32 %v1139, 0.2
          %v1204 = vmul.f32 %v1140, 0.2
          %v1205 = vmul.f32 %v1141, 0.2
          %v1206 = vmul.f32 %v1142, 0.2
          %v1207 = vmul.f32 %v1143, 0.2
          %v1208 = vsel %vm1144, %v1112, %v1176
          %v1209 = vsel %vm1145, %v1113, %v1177
          %v1210 = vsel %vm1146, %v1114, %v1178
          %v1211 = vsel %vm1147, %v1115, %v1179
          %v1212 = vsel %vm1148, %v1116, %v1180
          %v1213 = vsel %vm1149, %v1117, %v1181
          %v1214 = vsel %vm1150, %v1118, %v1182
          %v1215 = vsel %vm1151, %v1119, %v1183
          %v1216 = vsel %vm1152, %v1120, %v1184
          %v1217 = vsel %vm1153, %v1121, %v1185
          %v1218 = vsel %vm1154, %v1122, %v1186
          %v1219 = vsel %vm1155, %v1123, %v1187
          %v1220 = vsel %vm1156, %v1124, %v1188
          %v1221 = vsel %vm1157, %v1125, %v1189
          %v1222 = vsel %vm1158, %v1126, %v1190
          %v1223 = vsel %vm1159, %v1127, %v1191
          %v1224 = vsel %vm1160, %v1128, %v1192
          %v1225 = vsel %vm1161, %v1129, %v1193
          %v1226 = vsel %vm1162, %v1130, %v1194
          %v1227 = vsel %vm1163, %v1131, %v1195
          %v1228 = vsel %vm1164, %v1132, %v1196
          %v1229 = vsel %vm1165, %v1133, %v1197
          %v1230 = vsel %vm1166, %v1134, %v1198
          %v1231 = vsel %vm1167, %v1135, %v1199
          %v1232 = vsel %vm1168, %v1136, %v1200
          %v1233 = vsel %vm1169, %v1137, %v1201
          %v1234 = vsel %vm1170, %v1138, %v1202
          %v1235 = vsel %vm1171, %v1139, %v1203
          %v1236 = vsel %vm1172, %v1140, %v1204
          %v1237 = vsel %vm1173, %v1141, %v1205
          %v1238 = vsel %vm1174, %v1142, %v1206
          %v1239 = vsel %vm1175, %v1143, %v1207
          %1240 = vst [vmem:[%s201] sm:$0xff] %v1208
          %1241 = vst [vmem:[%s201 + $0x8] sm:$0xff] %v1209
          %1242 = vst [vmem:[%s201 + $0x10] sm:$0xff] %v1210
          %1243 = vst [vmem:[%s201 + $0x18] sm:$0xff] %v1211
          %1244 = vst [vmem:[%s201 + $0x20] sm:$0xff] %v1212
          %1245 = vst [vmem:[%s201 + $0x28] sm:$0xff] %v1213
          %1246 = vst [vmem:[%s201 + $0x30] sm:$0xff] %v1214
          %1247 = vst [vmem:[%s201 + $0x38] sm:$0xff] %v1215
          %1248 = vst [vmem:[%s201 + $0x40] sm:$0xff] %v1216
          %1249 = vst [vmem:[%s201 + $0x48] sm:$0xff] %v1217
          %1250 = vst [vmem:[%s201 + $0x50] sm:$0xff] %v1218
          %1251 = vst [vmem:[%s201 + $0x58] sm:$0xff] %v1219
          %1252 = vst [vmem:[%s201 + $0x60] sm:$0xff] %v1220
          %1253 = vst [vmem:[%s201 + $0x68] sm:$0xff] %v1221
          %1254 = vst [vmem:[%s201 + $0x70] sm:$0xff] %v1222
          %1255 = vst [vmem:[%s201 + $0x78] sm:$0xff] %v1223
          %1256 = vst [vmem:[%s201 + $0x80] sm:$0xff] %v1224
          %1257 = vst [vmem:[%s201 + $0x88] sm:$0xff] %v1225
          %1258 = vst [vmem:[%s201 + $0x90] sm:$0xff] %v1226
          %1259 = vst [vmem:[%s201 + $0x98] sm:$0xff] %v1227
          %1260 = vst [vmem:[%s201 + $0xa0] sm:$0xff] %v1228
          %1261 = vst [vmem:[%s201 + $0xa8] sm:$0xff] %v1229
          %1262 = vst [vmem:[%s201 + $0xb0] sm:$0xff] %v1230
          %1263 = vst [vmem:[%s201 + $0xb8] sm:$0xff] %v1231
          %1264 = vst [vmem:[%s201 + $0xc0] sm:$0xff] %v1232
          %1265 = vst [vmem:[%s201 + $0xc8] sm:$0xff] %v1233
          %1266 = vst [vmem:[%s201 + $0xd0] sm:$0xff] %v1234
          %1267 = vst [vmem:[%s201 + $0xd8] sm:$0xff] %v1235
          %1268 = vst [vmem:[%s201 + $0xe0] sm:$0xff] %v1236
          %1269 = vst [vmem:[%s201 + $0xe8] sm:$0xff] %v1237
          %1270 = vst [vmem:[%s201 + $0xf0] sm:$0xff] %v1238
          %1271 = vst [vmem:[%s201 + $0xf8] sm:$0xff] %v1239
        $region44: #{tpu_custom_call.1} parent=27 // pred_fallthru
          _
        %s1272 = sand.u32 %s94, 1
        %s1273 = scalar_lea.sflag [#allocation5], %s1272
        %s1274 = sand.u32 %s94, 1
        %s1275 = smul.addr %s1274, 256
        %s1276 = scalar_lea.vmem [#allocation8], %s1275
        // Predicated region
        $region45: #{tpu_custom_call.1} parent=27 // pred_check
          %p1277 = pneg %p104
        $region46: #{tpu_custom_call.1} parent=27 // pred_check_branch
          %1279 = sbr.rel (%p1277) target = $region48
        $region47: #{tpu_custom_call.1} parent=27 // pred_region
          %s1280 = smul.u32 32, %s24
          %s1282 = ssub.s32 4096, 4096
          %1283 = vsyncadd %s1273, %s1282
          %s1284 = smul.addr %s1280, 128
          %s1285 = scalar_lea.hbm %s2, %s1284
          %s1286 = sshll.u32 %s1276, 4
          %s1287 = int_to_ptr.vmem [resolvable:$true] %s1286
          %1292 = dma.vmem_to_hbm [thread:$0]  %s1287, 4096, %s1285, %s1273, 128, 128, 8
        $region48: #{tpu_custom_call.1} parent=27 // pred_fallthru
          _
      $region28: #{tpu_custom_call.1} parent=5 // pred_fallthru
        _
      %p1293 = scmp.le.s32.totalorder 2, %s15
      // Predicated region
      $region49: #{tpu_custom_call.1} parent=5 // pred_check
        %p1294 = pneg %p1293
      $region50: #{tpu_custom_call.1} parent=5 // pred_check_branch
        %1296 = sbr.rel (%p1294) target = $region52
      $region51: #{tpu_custom_call.1} parent=5 // pred_region
        %s1297 = ssub.s32 %s15, 2
        // Predicated region
        $region53: #{tpu_custom_call.1} parent=51 // pred_check
          %p1298 = pneg %p110
        $region54: #{tpu_custom_call.1} parent=51 // pred_check_branch
          %1300 = sbr.rel (%p1298) target = $region56
        $region55: #{tpu_custom_call.1} parent=51 // pred_region
          %s1301 = sand.u32 %s95, 1
          %s1302 = scalar_lea.sflag [#allocation5], %s1301
          %s1303 = sand.u32 %s95, 1
          %s1304 = smul.addr %s1303, 256
          %s1305 = scalar_lea.vmem [#allocation8], %s1304
          %1306 = dma.done %s1302, 4096
        $region56: #{tpu_custom_call.1} parent=51 // pred_fallthru
          _
      $region52: #{tpu_custom_call.1} parent=5 // pred_fallthru
        _
    $region6: #{tpu_custom_call.1} parent=1 // loop_footer
      %s19 = sadd.s32 1, %s15
    $region7: #{tpu_custom_call.1} parent=1 // loop_footer_branch
      %14 = sbr.rel target = $region3
    $region8: #{tpu_custom_call.1} parent=1 // loop_exit
      _
    %1307 = vsyncpa [#allocation4], 1
    %s1308 = scalar_lea.sflag [#allocation4], 1
    %1309 = vsyncpa %s1308, 1
    %1310 = vsyncpa [#allocation7], 1
    %s1311 = scalar_lea.sflag [#allocation7], 1
    %1312 = vsyncpa %s1311, 1
    %1313 = vsyncpa [#allocation5], 1
    %s1314 = scalar_lea.sflag [#allocation5], 1
    %1315 = vsyncpa %s1314, 1

</llo_original>
